<compile_context>
chip_gen: v7x
topology: tpu7x:2x2x1
jax: 0.10.0
libtpu: 0.0.40
codegen_flags: <defaults>
</compile_context>

<pallas_src>
import functools

import jax
import jax.numpy as jnp
from jax.experimental import pallas as pl
from jax.experimental.pallas import tpu as pltpu

LANES = 128
MAX_BLOCK_ROWS = 2048     # (2048,128) f32 tile = 1 MiB per input per buffer
ROW_ALIGN = 32            # split-block row alignment (f32/bf16/int8 friendly)
NUM_SPLITS = 2            # leading "parallel" axis for megacore sharding
NUM_BANDS = 5             # pos, yp, yp*pos, yp^2, yp^2*pos
OUT_ROWS = 8 * NUM_BANDS  # each band stores the full (8,128) MXU result


def _ceil_to(x: int, m: int) -> int:
    return ((x + m - 1) // m) * m


def _moment_sums_kernel(yp_ref, yt_ref, out_ref, *, rows, block_rows, steps,
                        need_mask):
    """Accumulate five masked moment sums for one (block_rows, 128) tile.

    out_ref block is (1, 40, 128); band k = rows [8k, 8k+8) holds lane-wise
    partial sums (all 8 rows of a band are identical) of
      [pos, yp, yp*pos, yp^2, yp^2*pos].
    """
    s = pl.program_id(0)
    i = pl.program_id(1)

    @pl.when(i == 0)
    def _init():
        out_ref[...] = jnp.zeros_like(out_ref)

    yp = yp_ref[...].astype(jnp.float32)       # (block_rows, 128)
    yt = yt_ref[...]
    pos_bool = (yt == 1)                       # labels assumed in {0, 1}

    if need_mask:
        # Only rows < `rows` of the logical (unclamped) tile are real data;
        # anything beyond (Pallas overhang / clamped duplicate tile) is zeroed.
        base = (s * steps + i) * block_rows
        row_id = jax.lax.broadcasted_iota(jnp.int32, (block_rows, LANES), 0)
        valid = row_id < (rows - base)
        pos_bool = jnp.logical_and(pos_bool, valid)
        yp = jnp.where(valid, yp, 0.0)

    pos = pos_bool.astype(jnp.float32)
    yp_pos = yp * pos
    yp2 = yp * yp
    yp2_pos = yp * yp_pos

    # Offload the row reductions to the otherwise-idle MXU: ones @ X gives the
    # per-lane column sums replicated across 8 sublanes.
    ones = jnp.ones((8, block_rows), jnp.float32)

    def rowsum(x):
        return jnp.dot(ones, x, preferred_element_type=jnp.float32)  # (8,128)

    out_ref[0, 0:8, :] += rowsum(pos)
    out_ref[0, 8:16, :] += rowsum(yp)
    out_ref[0, 16:24, :] += rowsum(yp_pos)
    out_ref[0, 24:32, :] += rowsum(yp2)
    out_ref[0, 32:40, :] += rowsum(yp2_pos)


def aucm_loss_pallas(y_pred, y_true, a, b, alpha, margin=1.0):
    """y_pred, y_true: shape (N,) (labels must be {0,1}). a, b, alpha: (1,).

    Returns the AUCM loss with shape (1,), matching the torch module
    (imratio=None branch: p is computed from y_true)."""
    n = int(y_pred.shape[0])
    yp = y_pred.reshape(-1)
    yt = y_true.reshape(-1)

    # Minimal pad: only up to the next lane multiple (no-op when N % 128 == 0).
    # Zero padding is harmless: yp=0 adds nothing to any moment sum and yt=0
    # is not a positive label; neg-side stats use the true n outside.
    rem = (-n) % LANES
    if rem:
        yp = jnp.pad(yp, (0, rem))
        yt = jnp.pad(yt, (0, rem))
    rows = (n + rem) // LANES
    yp2d = yp.reshape(rows, LANES)
    yt2d = yt.reshape(rows, LANES)

    if rows <= MAX_BLOCK_ROWS:
        num_splits = 1
        block_rows = rows          # single full-extent block, no masking
    else:
        num_splits = NUM_SPLITS
        block_rows = min(MAX_BLOCK_ROWS,
                         _ceil_to(-(-rows // num_splits), ROW_ALIGN))
    steps = -(-rows // (num_splits * block_rows))
    need_mask = (num_splits * steps * block_rows) != rows
    last_blk = (rows - 1) // block_rows   # clamp so no DMA starts out of range

    def in_map(s, i):
        return (jnp.minimum(s * steps + i, last_blk), 0)

    kernel = functools.partial(
        _moment_sums_kernel,
        rows=rows, block_rows=block_rows, steps=steps, need_mask=need_mask)

    partials = pl.pallas_call(
        kernel,
        out_shape=jax.ShapeDtypeStruct((num_splits, OUT_ROWS, LANES),
                                       jnp.float32),
        grid=(num_splits, steps),
        in_specs=[
            pl.BlockSpec((block_rows, LANES), in_map),
            pl.BlockSpec((block_rows, LANES), in_map),
        ],
        out_specs=pl.BlockSpec((1, OUT_ROWS, LANES), lambda s, i: (s, 0, 0)),
        compiler_params=pltpu.CompilerParams(
            dimension_semantics=("parallel", "arbitrary"),
            vmem_limit_bytes=32 * 1024 * 1024,
        ),
    )(yp2d, yt2d)

    # Collapse per-split / per-lane partials once (rows of each band are
    # identical -> take row 0 of every band), then finish with scalar math.
    sums = jnp.sum(partials[:, ::8, :], axis=(0, 2))   # (5,)
    n_pos = sums[0]
    s_yp = sums[1]
    s_yp_pos = sums[2]
    s_yp2 = sums[3]
    s_yp2_pos = sums[4]

    # Neg-side stats by subtraction (labels in {0,1}; padded/masked yp == 0).
    n_neg = n - n_pos
    s_yp_neg = s_yp - s_yp_pos
    s_yp2_neg = s_yp2 - s_yp2_pos

    inv_n = jnp.float32(1.0 / n)
    a = a.astype(jnp.float32)
    b = b.astype(jnp.float32)
    alpha = alpha.astype(jnp.float32)
    margin = jnp.float32(margin)

    p = n_pos * inv_n                              # imratio=None branch
    # torch.mean divides by N with the mask applied elementwise:
    mean_pos_sq = (s_yp2_pos - 2.0 * a * s_yp_pos + a * a * n_pos) * inv_n
    mean_neg_sq = (s_yp2_neg - 2.0 * b * s_yp_neg + b * b * n_neg) * inv_n
    mean_pred_pos = s_yp_pos * inv_n
    mean_pred_neg = s_yp_neg * inv_n

    loss = (
        (1.0 - p) * mean_pos_sq
        + p * mean_neg_sq
        + 2.0 * alpha * (p * (1.0 - p) * margin
                         + (p * mean_pred_neg - (1.0 - p) * mean_pred_pos))
        - p * (1.0 - p) * alpha * alpha
    )
    return loss


def aucm_loss_ref(y_pred, y_true, a, b, alpha, margin=1.0):
    """Pure-JAX reference mirroring the torch module exactly."""
    n = y_true.shape[0]
    p = jnp.sum((y_true == 1).astype(jnp.float32)) / n
    yp = y_pred.astype(jnp.float32).reshape(-1, 1)
    yt = y_true.reshape(-1, 1)
    pos = (yt == 1).astype(jnp.float32)
    neg = (yt == 0).astype(jnp.float32)
    loss = ((1 - p) * jnp.mean((yp - a) ** 2 * pos)
            + p * jnp.mean((yp - b) ** 2 * neg)
            + 2 * alpha * (p * (1 - p) * margin
                           + jnp.mean(p * yp * neg - (1 - p) * yp * pos))
            - p * (1 - p) * alpha ** 2)
    return loss


if __name__ == "__main__":
    key = jax.random.PRNGKey(0)
    k1, k2, k3, k4 = jax.random.split(key, 4)

    # Module __init__ zero-initializes a, b, alpha; use small non-zero values
    # so every term of the loss is exercised.
    a = jnp.array([0.1], dtype=jnp.float32)
    b = jnp.array([-0.2], dtype=jnp.float32)
    alpha = jnp.array([0.05], dtype=jnp.float32)

    # Small case: single-block path, N not a multiple of 128 (minimal pad).
    N1 = 1000
    yp1 = jax.random.normal(k1, (N1,), dtype=jnp.float32)
    yt1 = (jax.random.uniform(k2, (N1,)) < 0.3).astype(jnp.float32)
    loss1 = aucm_loss_pallas(yp1, yt1, a, b, alpha, margin=1.0)
    jax.block_until_ready(loss1)
    ref1 = aucm_loss_ref(yp1, yt1, a, b, alpha, margin=1.0)
    assert loss1.shape == (1,), loss1.shape
    assert jnp.allclose(loss1, ref1, atol=1e-5, rtol=1e-5), (loss1, ref1)

    # Larger case: exercises the 2-split grid, clamped index_map and the
    # in-kernel tail mask (rows not a multiple of the block size).
    N2 = 524_701
    yp2 = jax.random.normal(k3, (N2,), dtype=jnp.float32)
    yt2 = (jax.random.uniform(k4, (N2,)) < 0.25).astype(jnp.float32)
    loss2 = aucm_loss_pallas(yp2, yt2, a, b, alpha, margin=1.0)
    jax.block_until_ready(loss2)
    ref2 = aucm_loss_ref(yp2, yt2, a, b, alpha, margin=1.0)
    assert loss2.shape == (1,), loss2.shape
    assert jnp.allclose(loss2, ref2, atol=1e-5, rtol=1e-4), (loss2, ref2)

    print("KERNEL_OK")
</pallas_src>

<mosaic_0001>
module attributes {stable_mosaic.version = 11 : i64} {
  func.func @_moment_sums_kernel(%arg0: i32, %arg1: i32, %arg2: memref<8x128xf32, #tpu.memory_space<vmem>>, %arg3: memref<8x128xf32, #tpu.memory_space<vmem>>, %arg4: memref<1x40x128xf32, #tpu.memory_space<vmem>>) attributes {dimension_semantics = [#tpu.dimension_semantics<parallel>, #tpu.dimension_semantics<arbitrary>], iteration_bounds = array<i64: 1, 1>, scalar_prefetch = 0 : i64, scratch_operands = 0 : i64, tpu.core_type = #tpu.core_type<tc>, window_params = [{transform_indices = @transform_0, window_bounds = array<i64: 8, 128>}, {transform_indices = @transform_1, window_bounds = array<i64: 8, 128>}, {transform_indices = @transform_2, window_bounds = array<i64: 1, 40, 128>}]} {
    %c0_i32 = arith.constant 0 : i32
    %0 = arith.cmpi eq, %arg1, %c0_i32 : i32
    %1 = arith.extui %0 : i1 to i32
    %c0_i32_0 = arith.constant 0 : i32
    %2 = arith.cmpi ne, %1, %c0_i32_0 : i32
    scf.if %2 {
      %cst_36 = arith.constant 0.000000e+00 : f32
      %48 = vector.broadcast %cst_36 : f32 to vector<1x40x128xf32>
      %c0_37 = arith.constant 0 : index
      %c0_38 = arith.constant 0 : index
      %c0_39 = arith.constant 0 : index
      %49 = vector.load %arg4[%c0_37, %c0_38, %c0_39] : memref<1x40x128xf32, #tpu.memory_space<vmem>>, vector<1x40x128xf32>
      tpu.vector_store %arg4[%c0_37, %c0_38, %c0_39], %48 {strides = array<i32>} : memref<1x40x128xf32, #tpu.memory_space<vmem>>, vector<1x40x128xf32>,
    } else {
    }
    %c0 = arith.constant 0 : index
    %c0_1 = arith.constant 0 : index
    %3 = vector.load %arg2[%c0, %c0_1] : memref<8x128xf32, #tpu.memory_space<vmem>>, vector<8x128xf32>
    %c0_2 = arith.constant 0 : index
    %c0_3 = arith.constant 0 : index
    %4 = vector.load %arg3[%c0_2, %c0_3] : memref<8x128xf32, #tpu.memory_space<vmem>>, vector<8x128xf32>
    %cst = arith.constant 1.000000e+00 : f32
    %5 = vector.broadcast %cst : f32 to vector<8x128xf32>
    %6 = arith.cmpf oeq, %4, %5 : vector<8x128xf32>
    %7 = arith.extui %6 : vector<8x128xi1> to vector<8x128xi32>
    %8 = arith.sitofp %7 : vector<8x128xi32> to vector<8x128xf32>
    %9 = arith.mulf %3, %8 : vector<8x128xf32>
    %10 = arith.mulf %3, %3 : vector<8x128xf32>
    %11 = arith.mulf %3, %9 : vector<8x128xf32>
    %cst_4 = arith.constant 1.000000e+00 : f32
    %12 = vector.broadcast %cst_4 : f32 to vector<8x8xf32>
    %c0_5 = arith.constant 0 : index
    %c0_6 = arith.constant 0 : index
    %c0_7 = arith.constant 0 : index
    %13 = vector.load %arg4[%c0_5, %c0_6, %c0_7] : memref<1x40x128xf32, #tpu.memory_space<vmem>>, vector<1x8x128xf32>
    %14 = vector.shape_cast %13 : vector<1x8x128xf32> to vector<8x128xf32>
    %cst_8 = arith.constant dense<0.000000e+00> : vector<8x128xf32>
    %15 = tpu.matmul %12, %8, %cst_8 {dimension_numbers = #tpu.dot_dimension_numbers<[1], [0], [0], [1], [0, 0, 1, 1], [], []>} : vector<8x8xf32>, vector<8x128xf32>, vector<8x128xf32> -> vector<8x128xf32>
    %16 = arith.addf %14, %15 : vector<8x128xf32>
    %c0_9 = arith.constant 0 : index
    %c0_10 = arith.constant 0 : index
    %c0_11 = arith.constant 0 : index
    %17 = vector.load %arg4[%c0_9, %c0_10, %c0_11] : memref<1x40x128xf32, #tpu.memory_space<vmem>>, vector<1x8x128xf32>
    %18 = vector.shape_cast %17 : vector<1x8x128xf32> to vector<8x128xf32>
    %19 = vector.shape_cast %16 : vector<8x128xf32> to vector<1x8x128xf32>
    tpu.vector_store %arg4[%c0_9, %c0_10, %c0_11], %19 {strides = array<i32>} : memref<1x40x128xf32, #tpu.memory_space<vmem>>, vector<1x8x128xf32>,
    %c0_12 = arith.constant 0 : index
    %c8 = arith.constant 8 : index
    %c0_13 = arith.constant 0 : index
    %20 = vector.load %arg4[%c0_12, %c8, %c0_13] : memref<1x40x128xf32, #tpu.memory_space<vmem>>, vector<1x8x128xf32>
    %21 = vector.shape_cast %20 : vector<1x8x128xf32> to vector<8x128xf32>
    %cst_14 = arith.constant dense<0.000000e+00> : vector<8x128xf32>
    %22 = tpu.matmul %12, %3, %cst_14 {dimension_numbers = #tpu.dot_dimension_numbers<[1], [0], [0], [1], [0, 0, 1, 1], [], []>} : vector<8x8xf32>, vector<8x128xf32>, vector<8x128xf32> -> vector<8x128xf32>
    %23 = arith.addf %21, %22 : vector<8x128xf32>
    %c0_15 = arith.constant 0 : index
    %c8_16 = arith.constant 8 : index
    %c0_17 = arith.constant 0 : index
    %24 = vector.load %arg4[%c0_15, %c8_16, %c0_17] : memref<1x40x128xf32, #tpu.memory_space<vmem>>, vector<1x8x128xf32>
    %25 = vector.shape_cast %24 : vector<1x8x128xf32> to vector<8x128xf32>
    %26 = vector.shape_cast %23 : vector<8x128xf32> to vector<1x8x128xf32>
    tpu.vector_store %arg4[%c0_15, %c8_16, %c0_17], %26 {strides = array<i32>} : memref<1x40x128xf32, #tpu.memory_space<vmem>>, vector<1x8x128xf32>,
    %c0_18 = arith.constant 0 : index
    %c16 = arith.constant 16 : index
    %c0_19 = arith.constant 0 : index
    %27 = vector.load %arg4[%c0_18, %c16, %c0_19] : memref<1x40x128xf32, #tpu.memory_space<vmem>>, vector<1x8x128xf32>
    %28 = vector.shape_cast %27 : vector<1x8x128xf32> to vector<8x128xf32>
    %cst_20 = arith.constant dense<0.000000e+00> : vector<8x128xf32>
    %29 = tpu.matmul %12, %9, %cst_20 {dimension_numbers = #tpu.dot_dimension_numbers<[1], [0], [0], [1], [0, 0, 1, 1], [], []>} : vector<8x8xf32>, vector<8x128xf32>, vector<8x128xf32> -> vector<8x128xf32>
    %30 = arith.addf %28, %29 : vector<8x128xf32>
    %c0_21 = arith.constant 0 : index
    %c16_22 = arith.constant 16 : index
    %c0_23 = arith.constant 0 : index
    %31 = vector.load %arg4[%c0_21, %c16_22, %c0_23] : memref<1x40x128xf32, #tpu.memory_space<vmem>>, vector<1x8x128xf32>
    %32 = vector.shape_cast %31 : vector<1x8x128xf32> to vector<8x128xf32>
    %33 = vector.shape_cast %30 : vector<8x128xf32> to vector<1x8x128xf32>
    tpu.vector_store %arg4[%c0_21, %c16_22, %c0_23], %33 {strides = array<i32>} : memref<1x40x128xf32, #tpu.memory_space<vmem>>, vector<1x8x128xf32>,
    %c0_24 = arith.constant 0 : index
    %c24 = arith.constant 24 : index
    %c0_25 = arith.constant 0 : index
    %34 = vector.load %arg4[%c0_24, %c24, %c0_25] : memref<1x40x128xf32, #tpu.memory_space<vmem>>, vector<1x8x128xf32>
    %35 = vector.shape_cast %34 : vector<1x8x128xf32> to vector<8x128xf32>
    %cst_26 = arith.constant dense<0.000000e+00> : vector<8x128xf32>
    %36 = tpu.matmul %12, %10, %cst_26 {dimension_numbers = #tpu.dot_dimension_numbers<[1], [0], [0], [1], [0, 0, 1, 1], [], []>} : vector<8x8xf32>, vector<8x128xf32>, vector<8x128xf32> -> vector<8x128xf32>
    %37 = arith.addf %35, %36 : vector<8x128xf32>
    %c0_27 = arith.constant 0 : index
    %c24_28 = arith.constant 24 : index
    %c0_29 = arith.constant 0 : index
    %38 = vector.load %arg4[%c0_27, %c24_28, %c0_29] : memref<1x40x128xf32, #tpu.memory_space<vmem>>, vector<1x8x128xf32>
    %39 = vector.shape_cast %38 : vector<1x8x128xf32> to vector<8x128xf32>
    %40 = vector.shape_cast %37 : vector<8x128xf32> to vector<1x8x128xf32>
    tpu.vector_store %arg4[%c0_27, %c24_28, %c0_29], %40 {strides = array<i32>} : memref<1x40x128xf32, #tpu.memory_space<vmem>>, vector<1x8x128xf32>,
    %c0_30 = arith.constant 0 : index
    %c32 = arith.constant 32 : index
    %c0_31 = arith.constant 0 : index
    %41 = vector.load %arg4[%c0_30, %c32, %c0_31] : memref<1x40x128xf32, #tpu.memory_space<vmem>>, vector<1x8x128xf32>
    %42 = vector.shape_cast %41 : vector<1x8x128xf32> to vector<8x128xf32>
    %cst_32 = arith.constant dense<0.000000e+00> : vector<8x128xf32>
    %43 = tpu.matmul %12, %11, %cst_32 {dimension_numbers = #tpu.dot_dimension_numbers<[1], [0], [0], [1], [0, 0, 1, 1], [], []>} : vector<8x8xf32>, vector<8x128xf32>, vector<8x128xf32> -> vector<8x128xf32>
    %44 = arith.addf %42, %43 : vector<8x128xf32>
    %c0_33 = arith.constant 0 : index
    %c32_34 = arith.constant 32 : index
    %c0_35 = arith.constant 0 : index
    %45 = vector.load %arg4[%c0_33, %c32_34, %c0_35] : memref<1x40x128xf32, #tpu.memory_space<vmem>>, vector<1x8x128xf32>
    %46 = vector.shape_cast %45 : vector<1x8x128xf32> to vector<8x128xf32>
    %47 = vector.shape_cast %44 : vector<8x128xf32> to vector<1x8x128xf32>
    tpu.vector_store %arg4[%c0_33, %c32_34, %c0_35], %47 {strides = array<i32>} : memref<1x40x128xf32, #tpu.memory_space<vmem>>, vector<1x8x128xf32>,
    return
  }
  func.func @transform_0(%arg0: i32, %arg1: i32) -> (i32, i32) {
    %c1_i32 = arith.constant 1 : i32
    %0 = arith.muli %arg0, %c1_i32 : i32
    %1 = arith.addi %0, %arg1 : i32
    %c0_i32 = arith.constant 0 : i32
    %2 = arith.minsi %1, %c0_i32 : i32
    %c0_i32_0 = arith.constant 0 : i32
    %c0_i32_1 = arith.constant 0 : i32
    return %2, %c0_i32_0 : i32, i32
  }
  func.func @transform_1(%arg0: i32, %arg1: i32) -> (i32, i32) {
    %c1_i32 = arith.constant 1 : i32
    %0 = arith.muli %arg0, %c1_i32 : i32
    %1 = arith.addi %0, %arg1 : i32
    %c0_i32 = arith.constant 0 : i32
    %2 = arith.minsi %1, %c0_i32 : i32
    %c0_i32_0 = arith.constant 0 : i32
    %c0_i32_1 = arith.constant 0 : i32
    return %2, %c0_i32_0 : i32, i32
  }
  func.func @transform_2(%arg0: i32, %arg1: i32) -> (i32, i32, i32) {
    %c0_i32 = arith.constant 0 : i32
    %c0_i32_0 = arith.constant 0 : i32
    %c0_i32_1 = arith.constant 0 : i32
    return %arg0, %c0_i32, %c0_i32_0 : i32, i32, i32
  }
}

</mosaic_0001>

<llo_original>
// kernel: tpu_custom_call.1
$region0: #{tpu_custom_call.1}
  #allocation0 [shape = 'u32[]', space=smem, size = 0x4, offset = 0x4, fixed_abs, tag = 'smem constant byte address 0x4 - core index']
  #allocation1 [shape = 'u32[144,128]{1,0:T(1,128)}', space=vmem, size = 0x12000, scoped, tag = 'internal scratch']
  %s0 = inlined_call_operand.hbm [shape: f32[8,128], index: 0, kind: input, shape index: {}]
  %s1 = inlined_call_operand.hbm [shape: f32[8,128], index: 1, kind: input, shape index: {}]
  %s2 = inlined_call_operand.hbm [shape: f32[1,40,128], index: 2, kind: output, shape index: {}]
  %s3 = sld [smem:[#allocation0]]
  $region30: #{tpu_custom_call.1} parent=0
    _
  %s5 = ssub.s32 1, %s3
  %s6 = scalar_select 0, %s5, %s3
  $region1: #{tpu_custom_call.1} parent=0
    #allocation2 [shape = 'u8[4096]{0}', space=vmem, size = 0x1000, scoped, tag = 'input window, operand 0, single buffered']
    #allocation3 [shape = 's32[1]{0}', space=sflag, size = 0x4, scoped, tag = 'scoped memory for tpu_custom_call.1']
    #allocation4 [shape = 's32[1]{0}', space=sflag, size = 0x4, scoped, tag = 'scoped memory for tpu_custom_call.1']
    #allocation5 [shape = 'u8[4096]{0}', space=vmem, size = 0x1000, scoped, tag = 'input window, operand 1, single buffered']
    #allocation6 [shape = 's32[1]{0}', space=sflag, size = 0x4, scoped, tag = 'scoped memory for tpu_custom_call.1']
    #allocation7 [shape = 'u8[20480]{0}', space=vmem, size = 0x5000, scoped, tag = 'output window, operand 0, single buffered']
    %7 = vsyncpa [#allocation3], 0
    %8 = vsyncpa [#allocation6], 0
    %9 = vsyncpa [#allocation4], 0
    // Predicated region
    $region2: #{tpu_custom_call.1} parent=1 // pred_check
      _
    $region3: #{tpu_custom_call.1} parent=1 // pred_check_branch
      %11 = sbr.rel (0) target = $region5
    $region4: #{tpu_custom_call.1} parent=1 // pred_region
      %s12 = sadd.s32 0, 0
      %p13 = scmp.lt.s32.totalorder %s12, 0
      %s14 = scalar_select %p13, %s12, 0
      %s16 = ssub.s32 128, 128
      %17 = vsyncadd [#allocation3], %s16
      %s18 = smul.addr %s14, 128
      %s19 = scalar_lea.hbm %s0, %s18
      %s21 = sshll.u32 [#allocation2], 4
      %s22 = int_to_ptr.vmem [resolvable:$true] %s21
      %24 = dma.hbm_to_vmem [thread:$0]  %s19, 128, %s22, [#allocation3]
    $region5: #{tpu_custom_call.1} parent=1 // pred_fallthru
      _
    // Predicated region
    $region6: #{tpu_custom_call.1} parent=1 // pred_check
      _
    $region7: #{tpu_custom_call.1} parent=1 // pred_check_branch
      %26 = sbr.rel (0) target = $region9
    $region8: #{tpu_custom_call.1} parent=1 // pred_region
      %s27 = sadd.s32 0, 0
      %p28 = scmp.lt.s32.totalorder %s27, 0
      %s29 = scalar_select %p28, %s27, 0
      %s31 = ssub.s32 128, 128
      %32 = vsyncadd [#allocation6], %s31
      %s33 = smul.addr %s29, 128
      %s34 = scalar_lea.hbm %s1, %s33
      %s36 = sshll.u32 [#allocation5], 4
      %s37 = int_to_ptr.vmem [resolvable:$true] %s36
      %39 = dma.hbm_to_vmem [thread:$0]  %s34, 128, %s37, [#allocation6]
    $region9: #{tpu_custom_call.1} parent=1 // pred_fallthru
      _
    // Predicated region
    $region10: #{tpu_custom_call.1} parent=1 // pred_check
      _
    $region11: #{tpu_custom_call.1} parent=1 // pred_check_branch
      %41 = sbr.rel (0) target = $region13
    $region12: #{tpu_custom_call.1} parent=1 // pred_region
      %42 = dma.done [#allocation3], 128
    $region13: #{tpu_custom_call.1} parent=1 // pred_fallthru
      _
    // Predicated region
    $region14: #{tpu_custom_call.1} parent=1 // pred_check
      _
    $region15: #{tpu_custom_call.1} parent=1 // pred_check_branch
      %44 = sbr.rel (0) target = $region17
    $region16: #{tpu_custom_call.1} parent=1 // pred_region
      %45 = dma.done [#allocation6], 128
    $region17: #{tpu_custom_call.1} parent=1 // pred_fallthru
      _
    %s46 = sadd.s32 0, 0
    %p47 = scmp.lt.s32.totalorder %s46, 0
    %s48 = scalar_select %p47, %s46, 0
    %s49 = sadd.s32 0, 0
    %p50 = scmp.lt.s32.totalorder %s49, 0
    %s51 = scalar_select %p50, %s49, 0
    %p52 = scmp.eq.s32.totalorder 0, 0
    // Predicated region
    $region18: #{tpu_custom_call.1} parent=1 // pred_check
      %p53 = pneg %p52
    $region19: #{tpu_custom_call.1} parent=1 // pred_check_branch
      %55 = sbr.rel (%p53) target = $region21
    $region20: #{tpu_custom_call.1} parent=1 // pred_region
      %56 = vst [vmem:[#allocation7] sm:$0xff] 0.0
      %57 = vst [vmem:[#allocation7 + $0x8] sm:$0xff] 0.0
      %58 = vst [vmem:[#allocation7 + $0x10] sm:$0xff] 0.0
      %59 = vst [vmem:[#allocation7 + $0x18] sm:$0xff] 0.0
      %60 = vst [vmem:[#allocation7 + $0x20] sm:$0xff] 0.0
    $region21: #{tpu_custom_call.1} parent=1 // pred_fallthru
      _
    %v61 = vld [vmem:[#allocation2] sm:$0xff]
    %v62 = vld [vmem:[#allocation5] sm:$0xff]
    %vm63 = vcmp.eq.f32.partialorder %v62, 1.0
    %v64 = vsel %vm63, 1, 0
    %v65 = vcvt.s32.f32 %v64
    %v66 = vmul.f32 %v61, %v65
    %v67 = vmul.f32 %v61, %v61
    %v68 = vmul.f32 %v61, %v66
    %v69 = vld [vmem:[#allocation7] sm:$0xff]
    %vm70 = vcmask 64512
    %v72 = vsel %vm70, 1.0, 0
    %74 = vmatprep.subr.mxu0 0.0
    %75 = vmatpush1.msra.mxu0 %v65
    %76 = vmatprep.subr.mxu0 0.0
    %77 = vmatpush1.msra.mxu0 0.0
    %78 = vmatprep.subr.mxu0 0.0
    %79 = vmatpush1.msra.mxu0 0.0
    %80 = vmatprep.subr.mxu0 0.0
    %81 = vmatpush1.msra.mxu0 0.0
    %82 = vmatprep.subr.mxu0 0.0
    %83 = vmatpush1.msra.mxu0 0.0
    %84 = vmatprep.subr.mxu0 0.0
    %85 = vmatpush1.msra.mxu0 0.0
    %86 = vmatprep.subr.mxu0 0.0
    %87 = vmatpush1.msra.mxu0 0.0
    %88 = vmatprep.subr.mxu0 0.0
    %89 = vmatpush1.msra.mxu0 0.0
    %90 = vmatprep.subr.mxu0 0.0
    %91 = vmatpush1.msra.mxu0 0.0
    %92 = vmatprep.subr.mxu0 0.0
    %93 = vmatpush1.msra.mxu0 0.0
    %94 = vmatprep.subr.mxu0 0.0
    %95 = vmatpush1.msra.mxu0 0.0
    %96 = vmatprep.subr.mxu0 0.0
    %97 = vmatpush1.msra.mxu0 0.0
    %98 = vmatprep.subr.mxu0 0.0
    %99 = vmatpush1.msra.mxu0 0.0
    %100 = vmatprep.subr.mxu0 0.0
    %101 = vmatpush1.msra.mxu0 0.0
    %102 = vmatprep.subr.mxu0 0.0
    %103 = vmatpush1.msra.mxu0 0.0
    %104 = vmatprep.subr.mxu0 0.0
    %105 = vmatpush1.msra.mxu0 0.0
    %106 = vmatprep.subr.mxu0 0.0
    %107 = vmatpush1.msra.mxu0 0.0
    %108 = vmatprep.subr.mxu0 0.0
    %109 = vmatpush1.msra.mxu0 0.0
    %110 = vmatprep.subr.mxu0 0.0
    %111 = vmatpush1.msra.mxu0 0.0
    %112 = vmatprep.subr.mxu0 0.0
    %113 = vmatpush1.msra.mxu0 0.0
    %114 = vmatprep.subr.mxu0 0.0
    %115 = vmatpush1.msra.mxu0 0.0
    %116 = vmatprep.subr.mxu0 0.0
    %117 = vmatpush1.msra.mxu0 0.0
    %118 = vmatprep.subr.mxu0 0.0
    %119 = vmatpush1.msra.mxu0 0.0
    %120 = vmatprep.subr.mxu0 0.0
    %121 = vmatpush1.msra.mxu0 0.0
    %122 = vmatprep.subr.mxu0 0.0
    %123 = vmatpush1.msra.mxu0 0.0
    %124 = vmatprep.subr.mxu0 0.0
    %125 = vmatpush1.msra.mxu0 0.0
    %126 = vmatprep.subr.mxu0 0.0
    %127 = vmatpush1.msra.mxu0 0.0
    %128 = vmatprep.subr.mxu0 0.0
    %129 = vmatpush1.msra.mxu0 0.0
    %130 = vmatprep.subr.mxu0 0.0
    %131 = vmatpush1.msra.mxu0 0.0
    %132 = vmatprep.subr.mxu0 0.0
    %133 = vmatpush1.msra.mxu0 0.0
    %134 = vmatprep.subr.mxu0 0.0
    %135 = vmatpush1.msra.mxu0 0.0
    %136 = vmatprep.subr.mxu0 0.0
    %137 = vmatpush1.msra.mxu0 0.0
    %138 = vmatprep.mubr.f32.mxu0 0.0
    %139 = vmatmul.mubr.f32.gmra.mrb[0].mxu0 %v72
    %v140 = vpop.f32.mrb[0].mxu0
    %v141 = vadd.f32 0.0, %v140
    %v142 = vpop.f32.mrb[0].mxu0
    %143 = vdwg.mxu0
    %v144 = vadd.f32 %v69, %v141
    %145 = vst [vmem:[#allocation7] sm:$0xff] %v144
    %v146 = vld [vmem:[#allocation7 + $0x8] sm:$0xff]
    %147 = vmatprep.subr.mxu0 0.0
    %148 = vmatpush1.msra.mxu0 %v61
    %149 = vmatprep.subr.mxu0 0.0
    %150 = vmatpush1.msra.mxu0 0.0
    %151 = vmatprep.subr.mxu0 0.0
    %152 = vmatpush1.msra.mxu0 0.0
    %153 = vmatprep.subr.mxu0 0.0
    %154 = vmatpush1.msra.mxu0 0.0
    %155 = vmatprep.subr.mxu0 0.0
    %156 = vmatpush1.msra.mxu0 0.0
    %157 = vmatprep.subr.mxu0 0.0
    %158 = vmatpush1.msra.mxu0 0.0
    %159 = vmatprep.subr.mxu0 0.0
    %160 = vmatpush1.msra.mxu0 0.0
    %161 = vmatprep.subr.mxu0 0.0
    %162 = vmatpush1.msra.mxu0 0.0
    %163 = vmatprep.subr.mxu0 0.0
    %164 = vmatpush1.msra.mxu0 0.0
    %165 = vmatprep.subr.mxu0 0.0
    %166 = vmatpush1.msra.mxu0 0.0
    %167 = vmatprep.subr.mxu0 0.0
    %168 = vmatpush1.msra.mxu0 0.0
    %169 = vmatprep.subr.mxu0 0.0
    %170 = vmatpush1.msra.mxu0 0.0
    %171 = vmatprep.subr.mxu0 0.0
    %172 = vmatpush1.msra.mxu0 0.0
    %173 = vmatprep.subr.mxu0 0.0
    %174 = vmatpush1.msra.mxu0 0.0
    %175 = vmatprep.subr.mxu0 0.0
    %176 = vmatpush1.msra.mxu0 0.0
    %177 = vmatprep.subr.mxu0 0.0
    %178 = vmatpush1.msra.mxu0 0.0
    %179 = vmatprep.subr.mxu0 0.0
    %180 = vmatpush1.msra.mxu0 0.0
    %181 = vmatprep.subr.mxu0 0.0
    %182 = vmatpush1.msra.mxu0 0.0
    %183 = vmatprep.subr.mxu0 0.0
    %184 = vmatpush1.msra.mxu0 0.0
    %185 = vmatprep.subr.mxu0 0.0
    %186 = vmatpush1.msra.mxu0 0.0
    %187 = vmatprep.subr.mxu0 0.0
    %188 = vmatpush1.msra.mxu0 0.0
    %189 = vmatprep.subr.mxu0 0.0
    %190 = vmatpush1.msra.mxu0 0.0
    %191 = vmatprep.subr.mxu0 0.0
    %192 = vmatpush1.msra.mxu0 0.0
    %193 = vmatprep.subr.mxu0 0.0
    %194 = vmatpush1.msra.mxu0 0.0
    %195 = vmatprep.subr.mxu0 0.0
    %196 = vmatpush1.msra.mxu0 0.0
    %197 = vmatprep.subr.mxu0 0.0
    %198 = vmatpush1.msra.mxu0 0.0
    %199 = vmatprep.subr.mxu0 0.0
    %200 = vmatpush1.msra.mxu0 0.0
    %201 = vmatprep.subr.mxu0 0.0
    %202 = vmatpush1.msra.mxu0 0.0
    %203 = vmatprep.subr.mxu0 0.0
    %204 = vmatpush1.msra.mxu0 0.0
    %205 = vmatprep.subr.mxu0 0.0
    %206 = vmatpush1.msra.mxu0 0.0
    %207 = vmatprep.subr.mxu0 0.0
    %208 = vmatpush1.msra.mxu0 0.0
    %209 = vmatprep.subr.mxu0 0.0
    %210 = vmatpush1.msra.mxu0 0.0
    %211 = vmatprep.mubr.f32.mxu0 0.0
    %212 = vmatmul.mubr.f32.gmra.mrb[0].mxu0 %v72
    %v213 = vpop.f32.mrb[0].mxu0
    %v214 = vadd.f32 0.0, %v213
    %v215 = vpop.f32.mrb[0].mxu0
    %216 = vdwg.mxu0
    %v217 = vadd.f32 %v146, %v214
    %218 = vst [vmem:[#allocation7 + $0x8] sm:$0xff] %v217
    %v219 = vld [vmem:[#allocation7 + $0x10] sm:$0xff]
    %220 = vmatprep.subr.mxu0 0.0
    %221 = vmatpush1.msra.mxu0 %v66
    %222 = vmatprep.subr.mxu0 0.0
    %223 = vmatpush1.msra.mxu0 0.0
    %224 = vmatprep.subr.mxu0 0.0
    %225 = vmatpush1.msra.mxu0 0.0
    %226 = vmatprep.subr.mxu0 0.0
    %227 = vmatpush1.msra.mxu0 0.0
    %228 = vmatprep.subr.mxu0 0.0
    %229 = vmatpush1.msra.mxu0 0.0
    %230 = vmatprep.subr.mxu0 0.0
    %231 = vmatpush1.msra.mxu0 0.0
    %232 = vmatprep.subr.mxu0 0.0
    %233 = vmatpush1.msra.mxu0 0.0
    %234 = vmatprep.subr.mxu0 0.0
    %235 = vmatpush1.msra.mxu0 0.0
    %236 = vmatprep.subr.mxu0 0.0
    %237 = vmatpush1.msra.mxu0 0.0
    %238 = vmatprep.subr.mxu0 0.0
    %239 = vmatpush1.msra.mxu0 0.0
    %240 = vmatprep.subr.mxu0 0.0
    %241 = vmatpush1.msra.mxu0 0.0
    %242 = vmatprep.subr.mxu0 0.0
    %243 = vmatpush1.msra.mxu0 0.0
    %244 = vmatprep.subr.mxu0 0.0
    %245 = vmatpush1.msra.mxu0 0.0
    %246 = vmatprep.subr.mxu0 0.0
    %247 = vmatpush1.msra.mxu0 0.0
    %248 = vmatprep.subr.mxu0 0.0
    %249 = vmatpush1.msra.mxu0 0.0
    %250 = vmatprep.subr.mxu0 0.0
    %251 = vmatpush1.msra.mxu0 0.0
    %252 = vmatprep.subr.mxu0 0.0
    %253 = vmatpush1.msra.mxu0 0.0
    %254 = vmatprep.subr.mxu0 0.0
    %255 = vmatpush1.msra.mxu0 0.0
    %256 = vmatprep.subr.mxu0 0.0
    %257 = vmatpush1.msra.mxu0 0.0
    %258 = vmatprep.subr.mxu0 0.0
    %259 = vmatpush1.msra.mxu0 0.0
    %260 = vmatprep.subr.mxu0 0.0
    %261 = vmatpush1.msra.mxu0 0.0
    %262 = vmatprep.subr.mxu0 0.0
    %263 = vmatpush1.msra.mxu0 0.0
    %264 = vmatprep.subr.mxu0 0.0
    %265 = vmatpush1.msra.mxu0 0.0
    %266 = vmatprep.subr.mxu0 0.0
    %267 = vmatpush1.msra.mxu0 0.0
    %268 = vmatprep.subr.mxu0 0.0
    %269 = vmatpush1.msra.mxu0 0.0
    %270 = vmatprep.subr.mxu0 0.0
    %271 = vmatpush1.msra.mxu0 0.0
    %272 = vmatprep.subr.mxu0 0.0
    %273 = vmatpush1.msra.mxu0 0.0
    %274 = vmatprep.subr.mxu0 0.0
    %275 = vmatpush1.msra.mxu0 0.0
    %276 = vmatprep.subr.mxu0 0.0
    %277 = vmatpush1.msra.mxu0 0.0
    %278 = vmatprep.subr.mxu0 0.0
    %279 = vmatpush1.msra.mxu0 0.0
    %280 = vmatprep.subr.mxu0 0.0
    %281 = vmatpush1.msra.mxu0 0.0
    %282 = vmatprep.subr.mxu0 0.0
    %283 = vmatpush1.msra.mxu0 0.0
    %284 = vmatprep.mubr.f32.mxu0 0.0
    %285 = vmatmul.mubr.f32.gmra.mrb[0].mxu0 %v72
    %v286 = vpop.f32.mrb[0].mxu0
    %v287 = vadd.f32 0.0, %v286
    %v288 = vpop.f32.mrb[0].mxu0
    %289 = vdwg.mxu0
    %v290 = vadd.f32 %v219, %v287
    %291 = vst [vmem:[#allocation7 + $0x10] sm:$0xff] %v290
    %v292 = vld [vmem:[#allocation7 + $0x18] sm:$0xff]
    %293 = vmatprep.subr.mxu0 0.0
    %294 = vmatpush1.msra.mxu0 %v67
    %295 = vmatprep.subr.mxu0 0.0
    %296 = vmatpush1.msra.mxu0 0.0
    %297 = vmatprep.subr.mxu0 0.0
    %298 = vmatpush1.msra.mxu0 0.0
    %299 = vmatprep.subr.mxu0 0.0
    %300 = vmatpush1.msra.mxu0 0.0
    %301 = vmatprep.subr.mxu0 0.0
    %302 = vmatpush1.msra.mxu0 0.0
    %303 = vmatprep.subr.mxu0 0.0
    %304 = vmatpush1.msra.mxu0 0.0
    %305 = vmatprep.subr.mxu0 0.0
    %306 = vmatpush1.msra.mxu0 0.0
    %307 = vmatprep.subr.mxu0 0.0
    %308 = vmatpush1.msra.mxu0 0.0
    %309 = vmatprep.subr.mxu0 0.0
    %310 = vmatpush1.msra.mxu0 0.0
    %311 = vmatprep.subr.mxu0 0.0
    %312 = vmatpush1.msra.mxu0 0.0
    %313 = vmatprep.subr.mxu0 0.0
    %314 = vmatpush1.msra.mxu0 0.0
    %315 = vmatprep.subr.mxu0 0.0
    %316 = vmatpush1.msra.mxu0 0.0
    %317 = vmatprep.subr.mxu0 0.0
    %318 = vmatpush1.msra.mxu0 0.0
    %319 = vmatprep.subr.mxu0 0.0
    %320 = vmatpush1.msra.mxu0 0.0
    %321 = vmatprep.subr.mxu0 0.0
    %322 = vmatpush1.msra.mxu0 0.0
    %323 = vmatprep.subr.mxu0 0.0
    %324 = vmatpush1.msra.mxu0 0.0
    %325 = vmatprep.subr.mxu0 0.0
    %326 = vmatpush1.msra.mxu0 0.0
    %327 = vmatprep.subr.mxu0 0.0
    %328 = vmatpush1.msra.mxu0 0.0
    %329 = vmatprep.subr.mxu0 0.0
    %330 = vmatpush1.msra.mxu0 0.0
    %331 = vmatprep.subr.mxu0 0.0
    %332 = vmatpush1.msra.mxu0 0.0
    %333 = vmatprep.subr.mxu0 0.0
    %334 = vmatpush1.msra.mxu0 0.0
    %335 = vmatprep.subr.mxu0 0.0
    %336 = vmatpush1.msra.mxu0 0.0
    %337 = vmatprep.subr.mxu0 0.0
    %338 = vmatpush1.msra.mxu0 0.0
    %339 = vmatprep.subr.mxu0 0.0
    %340 = vmatpush1.msra.mxu0 0.0
    %341 = vmatprep.subr.mxu0 0.0
    %342 = vmatpush1.msra.mxu0 0.0
    %343 = vmatprep.subr.mxu0 0.0
    %344 = vmatpush1.msra.mxu0 0.0
    %345 = vmatprep.subr.mxu0 0.0
    %346 = vmatpush1.msra.mxu0 0.0
    %347 = vmatprep.subr.mxu0 0.0
    %348 = vmatpush1.msra.mxu0 0.0
    %349 = vmatprep.subr.mxu0 0.0
    %350 = vmatpush1.msra.mxu0 0.0
    %351 = vmatprep.subr.mxu0 0.0
    %352 = vmatpush1.msra.mxu0 0.0
    %353 = vmatprep.subr.mxu0 0.0
    %354 = vmatpush1.msra.mxu0 0.0
    %355 = vmatprep.subr.mxu0 0.0
    %356 = vmatpush1.msra.mxu0 0.0
    %357 = vmatprep.mubr.f32.mxu0 0.0
    %358 = vmatmul.mubr.f32.gmra.mrb[0].mxu0 %v72
    %v359 = vpop.f32.mrb[0].mxu0
    %v360 = vadd.f32 0.0, %v359
    %v361 = vpop.f32.mrb[0].mxu0
    %362 = vdwg.mxu0
    %v363 = vadd.f32 %v292, %v360
    %364 = vst [vmem:[#allocation7 + $0x18] sm:$0xff] %v363
    %v365 = vld [vmem:[#allocation7 + $0x20] sm:$0xff]
    %366 = vmatprep.subr.mxu0 0.0
    %367 = vmatpush1.msra.mxu0 %v68
    %368 = vmatprep.subr.mxu0 0.0
    %369 = vmatpush1.msra.mxu0 0.0
    %370 = vmatprep.subr.mxu0 0.0
    %371 = vmatpush1.msra.mxu0 0.0
    %372 = vmatprep.subr.mxu0 0.0
    %373 = vmatpush1.msra.mxu0 0.0
    %374 = vmatprep.subr.mxu0 0.0
    %375 = vmatpush1.msra.mxu0 0.0
    %376 = vmatprep.subr.mxu0 0.0
    %377 = vmatpush1.msra.mxu0 0.0
    %378 = vmatprep.subr.mxu0 0.0
    %379 = vmatpush1.msra.mxu0 0.0
    %380 = vmatprep.subr.mxu0 0.0
    %381 = vmatpush1.msra.mxu0 0.0
    %382 = vmatprep.subr.mxu0 0.0
    %383 = vmatpush1.msra.mxu0 0.0
    %384 = vmatprep.subr.mxu0 0.0
    %385 = vmatpush1.msra.mxu0 0.0
    %386 = vmatprep.subr.mxu0 0.0
    %387 = vmatpush1.msra.mxu0 0.0
    %388 = vmatprep.subr.mxu0 0.0
    %389 = vmatpush1.msra.mxu0 0.0
    %390 = vmatprep.subr.mxu0 0.0
    %391 = vmatpush1.msra.mxu0 0.0
    %392 = vmatprep.subr.mxu0 0.0
    %393 = vmatpush1.msra.mxu0 0.0
    %394 = vmatprep.subr.mxu0 0.0
    %395 = vmatpush1.msra.mxu0 0.0
    %396 = vmatprep.subr.mxu0 0.0
    %397 = vmatpush1.msra.mxu0 0.0
    %398 = vmatprep.subr.mxu0 0.0
    %399 = vmatpush1.msra.mxu0 0.0
    %400 = vmatprep.subr.mxu0 0.0
    %401 = vmatpush1.msra.mxu0 0.0
    %402 = vmatprep.subr.mxu0 0.0
    %403 = vmatpush1.msra.mxu0 0.0
    %404 = vmatprep.subr.mxu0 0.0
    %405 = vmatpush1.msra.mxu0 0.0
    %406 = vmatprep.subr.mxu0 0.0
    %407 = vmatpush1.msra.mxu0 0.0
    %408 = vmatprep.subr.mxu0 0.0
    %409 = vmatpush1.msra.mxu0 0.0
    %410 = vmatprep.subr.mxu0 0.0
    %411 = vmatpush1.msra.mxu0 0.0
    %412 = vmatprep.subr.mxu0 0.0
    %413 = vmatpush1.msra.mxu0 0.0
    %414 = vmatprep.subr.mxu0 0.0
    %415 = vmatpush1.msra.mxu0 0.0
    %416 = vmatprep.subr.mxu0 0.0
    %417 = vmatpush1.msra.mxu0 0.0
    %418 = vmatprep.subr.mxu0 0.0
    %419 = vmatpush1.msra.mxu0 0.0
    %420 = vmatprep.subr.mxu0 0.0
    %421 = vmatpush1.msra.mxu0 0.0
    %422 = vmatprep.subr.mxu0 0.0
    %423 = vmatpush1.msra.mxu0 0.0
    %424 = vmatprep.subr.mxu0 0.0
    %425 = vmatpush1.msra.mxu0 0.0
    %426 = vmatprep.subr.mxu0 0.0
    %427 = vmatpush1.msra.mxu0 0.0
    %428 = vmatprep.subr.mxu0 0.0
    %429 = vmatpush1.msra.mxu0 0.0
    %430 = vmatprep.mubr.f32.mxu0 0.0
    %431 = vmatmul.mubr.f32.gmra.mrb[0].mxu0 %v72
    %v432 = vpop.f32.mrb[0].mxu0
    %v433 = vadd.f32 0.0, %v432
    %v434 = vpop.f32.mrb[0].mxu0
    %435 = vdwg.mxu0
    %v436 = vadd.f32 %v365, %v433
    %437 = vst [vmem:[#allocation7 + $0x20] sm:$0xff] %v436
    // Predicated region
    $region22: #{tpu_custom_call.1} parent=1 // pred_check
      _
    $region23: #{tpu_custom_call.1} parent=1 // pred_check_branch
      %439 = sbr.rel (0) target = $region25
    $region24: #{tpu_custom_call.1} parent=1 // pred_region
      %s441 = ssub.s32 640, 640
      %442 = vsyncadd [#allocation4], %s441
      %s443 = sshll.u32 [#allocation7], 4
      %s444 = int_to_ptr.vmem [resolvable:$true] %s443
      %449 = dma.vmem_to_hbm [thread:$0]  %s444, 640, %s2, [#allocation4], 128, 128, 8
    $region25: #{tpu_custom_call.1} parent=1 // pred_fallthru
      _
    // Predicated region
    $region26: #{tpu_custom_call.1} parent=1 // pred_check
      _
    $region27: #{tpu_custom_call.1} parent=1 // pred_check_branch
      %451 = sbr.rel (0) target = $region29
    $region28: #{tpu_custom_call.1} parent=1 // pred_region
      %452 = dma.done [#allocation4], 640
    $region29: #{tpu_custom_call.1} parent=1 // pred_fallthru
      _
    %453 = vsyncpa [#allocation3], 1
    %454 = vsyncpa [#allocation6], 1
    %455 = vsyncpa [#allocation4], 1

</llo_original>
